<compile_context>
chip_gen: v5e
topology: v5e:2x2
jax: 0.10.0
libtpu: 0.0.40
codegen_flags: <defaults>
</compile_context>

<pallas_src>
import functools

import jax
import jax.numpy as jnp
from jax.experimental import pallas as pl
from jax.experimental.pallas import tpu as pltpu

_TARGET_TILE_BYTES = 2 * 1024 * 1024     # padded logits tile per buffer
_MAX_BLOCK_LANES = 64 * 1024             # lanes per (C, BLOCK_N) tile
_MAX_BLOCK_ROWS = 2048                   # rows per (BLOCK_M, C) tile
_LANE_KERNEL_MIN_C = 64                  # below this a lane-sparse (M, C)
                                         # kernel loses to one transpose pass


def _cdiv(a, b):
    return -(-a // b)


def _vmem_limit_bytes():
    """Scoped VMEM limit: generous on 128 MiB parts (v5e/v6e), <=48 MiB on
    v7x (64 MiB physical), safe fallback if the query is unavailable."""
    phys = 64 * 1024 * 1024
    try:
        info = pltpu.get_tpu_info()
        phys = int(getattr(info, "vmem_capacity_bytes", phys))
    except Exception:
        pass
    return max(32 * 1024 * 1024, min(64 * 1024 * 1024, phys - 16 * 1024 * 1024))


def _plan_spatial(num_classes, spatial, itemsize, want_split):
    """(block_n, parallel_splits, steps_per_split, n_blocks) for the
    classes-on-sublanes kernel."""
    pack = max(1, 4 // itemsize)                      # sublane packing (bf16=2)
    c_pad = _cdiv(num_classes, 8 * pack) * 8 * pack   # sublane-padded classes
    bn = _TARGET_TILE_BYTES // max(1, c_pad * itemsize)
    bn = max(128, min(_MAX_BLOCK_LANES, (bn // 128) * 128))
    # TODO(synk): for huge class counts (c_pad >~ 16K) even bn=128 blows the
    # v7x VMEM budget; that case needs class-axis tiling (online logsumexp).
    if spatial <= bn:
        bn = spatial                                  # full extent, one block
    n_blocks = _cdiv(spatial, bn)
    p = 2 if (want_split and n_blocks >= 2) else 1    # feed both v7x TCs
    steps = _cdiv(n_blocks, p)
    return int(bn), int(p), int(steps), int(n_blocks)


def _plan_rows(num_classes, rows, itemsize, want_split):
    """(block_m, parallel_splits, steps_per_split, n_blocks) for the
    classes-on-lanes kernel (2D (M, C) inputs)."""
    c_lanes = _cdiv(num_classes, 128) * 128           # lane-padded class axis
    bm = _TARGET_TILE_BYTES // max(1, c_lanes * itemsize)
    bm = max(256, min(_MAX_BLOCK_ROWS, (bm // 32) * 32))
    if rows <= bm:
        bm = rows
    n_blocks = _cdiv(rows, bm)
    p = 2 if (want_split and n_blocks >= 2) else 1
    steps = _cdiv(n_blocks, p)
    return int(bm), int(p), int(steps), int(n_blocks)


def _focal_term(om_pt, gamma):
    if gamma == 0.0:
        return jnp.ones_like(om_pt)
    if gamma == 1.0:
        return om_pt
    if gamma == 2.0:
        return om_pt * om_pt
    return jnp.power(om_pt, jnp.float32(gamma))


# --------------------------------------------------------------------------
# Kernel 1: classes on sublanes, spatial positions on lanes.
# Grid = (B, P, steps);  B and P "parallel", steps "arbitrary".
# --------------------------------------------------------------------------
def _focal_kernel_class_sublane(x_ref, y_ref, *rest, gamma, ignore_index,
                                n_cols, block_n, has_alpha):
    if has_alpha:
        alpha_ref, out_ref, acc_loss, acc_cnt = rest
    else:
        alpha_ref = None
        out_ref, acc_loss, acc_cnt = rest

    p = pl.program_id(1)
    j = pl.program_id(2)
    nj = pl.num_programs(2)

    @pl.when(j == 0)
    def _():
        acc_loss[...] = jnp.zeros_like(acc_loss)
        acc_cnt[...] = jnp.zeros_like(acc_cnt)

    x = x_ref[...]                              # (C, BN) logits, native dtype
    y = y_ref[...].astype(jnp.int32)            # (1, BN) class ids
    C, BN = x.shape

    # Validity: not ignored AND lane within the real spatial extent.  Column
    # indices use the *unclamped* block id, so overrun blocks from the ragged
    # P split (whose data is a clamped re-read) are fully masked out.
    col = (jax.lax.broadcasted_iota(jnp.int32, (1, BN), 1)
           + (p * nj + j) * block_n)
    valid = jnp.logical_and(y != ignore_index, col < n_cols)

    # Numerically stable log-softmax over the class (sublane) axis.  max /
    # subtract / one-hot gather run in the input dtype (packed bf16 VALU on
    # v6e/v7x); only the exp/lse and per-column math are f32.
    m = jnp.max(x, axis=0, keepdims=True)                       # (1, BN)
    z = x - m                                                   # (C, BN)
    lse = jnp.log(jnp.sum(jnp.exp(z.astype(jnp.float32)),
                          axis=0, keepdims=True))               # (1, BN)

    cls = jax.lax.broadcasted_iota(jnp.int32, (C, 1), 0)        # tiny iota
    onehot = cls == y                                           # (C, BN)
    z_t = jnp.sum(jnp.where(onehot, z, jnp.zeros((), z.dtype)),
                  axis=0, keepdims=True).astype(jnp.float32)    # z[y]

    log_pt = z_t - lse                                          # log_softmax[y]
    pt = jnp.exp(log_pt)
    om_pt = jnp.maximum(1.0 - pt, 0.0)        # clamp: pt can round above 1.0
    focal = _focal_term(om_pt, gamma)

    if has_alpha:
        # ce = NLLLoss(weight=alpha, reduction='none') = -alpha[y] * log_pt
        w_t = jnp.sum(jnp.where(onehot, alpha_ref[...], 0.0),
                      axis=0, keepdims=True)                    # alpha[y]
        loss = focal * (-w_t * log_pt)
    else:
        loss = focal * (-log_pt)

    # Vector accumulation (VPU only; masked lanes are dropped by the select).
    acc_loss[...] += jnp.where(valid, loss, 0.0)
    acc_cnt[...] += valid.astype(jnp.float32)

    @pl.when(j == nj - 1)
    def _():
        out_ref[0, 0] = jnp.sum(acc_loss[...])
        out_ref[0, 1] = jnp.sum(acc_cnt[...])


def _call_class_sublane(x3, y3, alpha_arr, gamma, ignore_index):
    B, C, S = (int(d) for d in x3.shape)
    bn, P, nj, n_blocks = _plan_spatial(C, S, x3.dtype.itemsize,
                                        want_split=(B < 2))
    last = n_blocks - 1

    def data_map(b, p, j):
        return (b, 0, jnp.minimum(p * nj + j, last))

    in_specs = [
        pl.BlockSpec((None, C, bn), data_map),   # logits
        pl.BlockSpec((None, 1, bn), data_map),   # targets
    ]
    args = [x3, y3]
    has_alpha = alpha_arr is not None
    if has_alpha:
        in_specs.append(pl.BlockSpec((C, 1), lambda b, p, j: (0, 0)))
        args.append(alpha_arr.reshape(C, 1))

    kernel = functools.partial(
        _focal_kernel_class_sublane, gamma=float(gamma),
        ignore_index=int(ignore_index), n_cols=S, block_n=bn,
        has_alpha=has_alpha)

    partials = pl.pallas_call(
        kernel,
        out_shape=jax.ShapeDtypeStruct((B, P, 2), jnp.float32),
        grid_spec=pltpu.PrefetchScalarGridSpec(
            num_scalar_prefetch=0,
            grid=(B, P, nj),
            in_specs=in_specs,
            out_specs=pl.BlockSpec((None, 1, 2), lambda b, p, j: (b, p, 0),
                                   memory_space=pltpu.SMEM),
            scratch_shapes=[
                pltpu.VMEM((1, bn), jnp.float32),   # loss partial sums
                pltpu.VMEM((1, bn), jnp.float32),   # valid-count partial sums
            ],
        ),
        compiler_params=pltpu.CompilerParams(
            dimension_semantics=("parallel", "parallel", "arbitrary"),
            vmem_limit_bytes=_vmem_limit_bytes()),
    )(*args)

    return jnp.sum(partials[..., 0]), jnp.sum(partials[..., 1])


# --------------------------------------------------------------------------
# Kernel 2: classes on lanes, rows on sublanes (native 2D (M, C) layout,
# avoids the wrapper-side HBM transpose).  Grid = (P, steps).
# --------------------------------------------------------------------------
def _focal_kernel_class_lane(x_ref, y_ref, *rest, gamma, ignore_index,
                             n_rows, block_m, has_alpha):
    if has_alpha:
        alpha_ref, out_ref, acc_loss, acc_cnt = rest
    else:
        alpha_ref = None
        out_ref, acc_loss, acc_cnt = rest

    p = pl.program_id(0)
    j = pl.program_id(1)
    nj = pl.num_programs(1)

    @pl.when(j == 0)
    def _():
        acc_loss[...] = jnp.zeros_like(acc_loss)
        acc_cnt[...] = jnp.zeros_like(acc_cnt)

    x = x_ref[...]                              # (BM, C) logits, native dtype
    y = y_ref[...].astype(jnp.int32)            # (BM, 1) class ids
    BM, C = x.shape

    row = (jax.lax.broadcasted_iota(jnp.int32, (BM, 1), 0)
           + (p * nj + j) * block_m)
    valid = jnp.logical_and(y != ignore_index, row < n_rows)

    m = jnp.max(x, axis=1, keepdims=True)                       # (BM, 1)
    z = x - m
    lse = jnp.log(jnp.sum(jnp.exp(z.astype(jnp.float32)),
                          axis=1, keepdims=True))

    cls = jax.lax.broadcasted_iota(jnp.int32, (1, C), 1)
    onehot = cls == y                                           # (BM, C)
    z_t = jnp.sum(jnp.where(onehot, z, jnp.zeros((), z.dtype)),
                  axis=1, keepdims=True).astype(jnp.float32)

    log_pt = z_t - lse
    pt = jnp.exp(log_pt)
    om_pt = jnp.maximum(1.0 - pt, 0.0)
    focal = _focal_term(om_pt, gamma)

    if has_alpha:
        w_t = jnp.sum(jnp.where(onehot, alpha_ref[...], 0.0),
                      axis=1, keepdims=True)
        loss = focal * (-w_t * log_pt)
    else:
        loss = focal * (-log_pt)

    acc_loss[...] += jnp.where(valid, loss, 0.0)
    acc_cnt[...] += valid.astype(jnp.float32)

    @pl.when(j == nj - 1)
    def _():
        out_ref[0, 0] = jnp.sum(acc_loss[...])
        out_ref[0, 1] = jnp.sum(acc_cnt[...])


def _call_class_lane(x2, y2, alpha_arr, gamma, ignore_index):
    M, C = (int(d) for d in x2.shape)
    bm, P, nj, n_blocks = _plan_rows(C, M, x2.dtype.itemsize, want_split=True)
    last = n_blocks - 1

    def data_map(p, j):
        return (jnp.minimum(p * nj + j, last), 0)

    in_specs = [
        pl.BlockSpec((bm, C), data_map),   # logits
        pl.BlockSpec((bm, 1), data_map),   # targets
    ]
    args = [x2, y2.reshape(M, 1)]
    has_alpha = alpha_arr is not None
    if has_alpha:
        in_specs.append(pl.BlockSpec((1, C), lambda p, j: (0, 0)))
        args.append(alpha_arr.reshape(1, C))

    kernel = functools.partial(
        _focal_kernel_class_lane, gamma=float(gamma),
        ignore_index=int(ignore_index), n_rows=M, block_m=bm,
        has_alpha=has_alpha)

    partials = pl.pallas_call(
        kernel,
        out_shape=jax.ShapeDtypeStruct((P, 2), jnp.float32),
        grid_spec=pltpu.PrefetchScalarGridSpec(
            num_scalar_prefetch=0,
            grid=(P, nj),
            in_specs=in_specs,
            out_specs=pl.BlockSpec((1, 2), lambda p, j: (p, 0),
                                   memory_space=pltpu.SMEM),
            scratch_shapes=[
                pltpu.VMEM((bm, 1), jnp.float32),
                pltpu.VMEM((bm, 1), jnp.float32),
            ],
        ),
        compiler_params=pltpu.CompilerParams(
            dimension_semantics=("parallel", "arbitrary"),
            vmem_limit_bytes=_vmem_limit_bytes()),
    )(*args)

    return jnp.sum(partials[:, 0]), jnp.sum(partials[:, 1])


# --------------------------------------------------------------------------
# Public wrapper (forward-pass semantics of MultiClassFocalLoss).
# --------------------------------------------------------------------------
def multi_class_focal_loss(x, y, alpha=None, gamma=2.0, reduction="mean",
                           ignore_index=-1):
    """Pallas equivalent of MultiClassFocalLoss.forward ('mean'/'sum').

    Note: targets outside [0, C) that are not ignore_index contribute 0 loss
    but are still counted as valid (PyTorch's NLLLoss would raise instead).
    """
    if reduction not in ("mean", "sum", "none"):
        raise ValueError('Reduction must be one of: "mean", "sum", "none".')
    if reduction == "none":
        # TODO(synk): 'none' returns a compacted, data-dependent-length loss
        # vector in PyTorch; no clean static-shape Pallas equivalent.
        raise NotImplementedError("reduction='none' is not supported")

    x = jnp.asarray(x)   # keep native dtype; f32 only where needed in-kernel
    y = jnp.asarray(y)
    alpha_arr = None if alpha is None else jnp.asarray(alpha, jnp.float32)

    if x.ndim > 2:
        B, C = int(x.shape[0]), int(x.shape[1])
        S = 1
        for d in x.shape[2:]:
            S *= int(d)
        x3 = x.reshape(B, C, S)            # free metadata reshape (C stays dim 1)
        y3 = y.reshape(B, 1, S)
        if y3.dtype != jnp.int32:
            y3 = y3.astype(jnp.int32)
        loss_sum, count = _call_class_sublane(x3, y3, alpha_arr, gamma,
                                              ignore_index)
    else:
        M, C = int(x.shape[0]), int(x.shape[1])
        y2 = y.reshape(M)
        if y2.dtype != jnp.int32:
            y2 = y2.astype(jnp.int32)
        if C >= _LANE_KERNEL_MIN_C:
            # Classes-on-lanes kernel: no HBM transpose pass.
            loss_sum, count = _call_class_lane(x, y2, alpha_arr, gamma,
                                               ignore_index)
        else:
            # Tiny class axis: a lane-sparse (M, C) kernel would be
            # step-overhead bound, so one XLA transpose pass is cheaper here.
            x3 = x.T.reshape(1, C, M)
            y3 = y2.reshape(1, 1, M)
            loss_sum, count = _call_class_sublane(x3, y3, alpha_arr, gamma,
                                                  ignore_index)

    if reduction == "sum":
        return loss_sum
    # mean over un-ignored elements; 0.0 when everything is ignored
    return loss_sum / jnp.maximum(count, 1.0)


# --------------------------------------------------------------------------
# Pure-JAX reference (mirrors the PyTorch forward) for validation.
# --------------------------------------------------------------------------
def _reference(x, y, alpha=None, gamma=2.0, reduction="mean", ignore_index=-1):
    x = jnp.asarray(x, jnp.float32)
    y = jnp.asarray(y, jnp.int32)
    if x.ndim > 2:
        C = x.shape[1]
        perm = (0,) + tuple(range(2, x.ndim)) + (1,)
        x = jnp.transpose(x, perm).reshape(-1, C)
        y = y.reshape(-1)
    valid = y != ignore_index
    y_safe = jnp.where(valid, y, 0)
    log_p = jax.nn.log_softmax(x, axis=-1)
    log_pt = jnp.take_along_axis(log_p, y_safe[:, None], axis=1)[:, 0]
    if alpha is None:
        w = jnp.ones_like(log_pt)
    else:
        w = jnp.asarray(alpha, jnp.float32)[y_safe]
    ce = -w * log_pt
    pt = jnp.exp(log_pt)
    focal = (1.0 - pt) ** gamma
    loss = focal * ce * valid.astype(jnp.float32)
    if reduction == "sum":
        return jnp.sum(loss)
    return jnp.sum(loss) / jnp.maximum(jnp.sum(valid.astype(jnp.float32)), 1.0)


if __name__ == "__main__":
    # Case A: NCHW segmentation-style logits (module's primary use case).
    k1, k2, k3 = jax.random.split(jax.random.PRNGKey(0), 3)
    B, C, H, W = 2, 4, 16, 16
    x = jax.random.normal(k1, (B, C, H, W), jnp.float32)
    y = jax.random.randint(k2, (B, H, W), 0, C, dtype=jnp.int32)
    y = jnp.where(jax.random.uniform(k3, (B, H, W)) < 0.2, jnp.int32(-1), y)
    out = jax.block_until_ready(multi_class_focal_loss(
        x, y, alpha=None, gamma=2.0, reduction="mean", ignore_index=-1))
    ref = _reference(x, y, None, 2.0, "mean", -1)
    assert jnp.allclose(out, ref, rtol=1e-5, atol=1e-5), ("case A", out, ref)

    # Case B: batch of 1, many classes, ragged spatial extent -> exercises the
    # per-class alpha gather, the non-integer-gamma path, the spatial
    # "parallel" split (both v7x TensorCores) and tail/overrun masking.
    k1, k2, k3, k4 = jax.random.split(jax.random.PRNGKey(1), 4)
    Cb, Sb = 256, 5000
    xb = jax.random.normal(k1, (1, Cb, Sb), jnp.float32)
    yb = jax.random.randint(k2, (1, Sb), 0, Cb, dtype=jnp.int32)
    yb = jnp.where(jax.random.uniform(k3, (1, Sb)) < 0.1, jnp.int32(-1), yb)
    alpha_b = jax.random.uniform(k4, (Cb,), jnp.float32, 0.5, 1.5)
    out_b = jax.block_until_ready(multi_class_focal_loss(
        xb, yb, alpha=alpha_b, gamma=1.5, reduction="sum", ignore_index=-1))
    ref_b = _reference(xb, yb, alpha_b, 1.5, "sum", -1)
    assert jnp.allclose(out_b, ref_b, rtol=1e-4, atol=1e-3), ("case B", out_b, ref_b)

    # Case C: plain (M, C) classification logits with a wide class axis ->
    # classes-on-lanes kernel, no wrapper-side HBM transpose.
    k1, k2 = jax.random.split(jax.random.PRNGKey(2), 2)
    M, Cc = 512, 256
    xc = jax.random.normal(k1, (M, Cc), jnp.float32)
    yc = jax.random.randint(k2, (M,), 0, Cc, dtype=jnp.int32)
    yc = yc.at[::7].set(-1)
    out_c = jax.block_until_ready(multi_class_focal_loss(
        xc, yc, alpha=None, gamma=2.0, reduction="mean", ignore_index=-1))
    ref_c = _reference(xc, yc, None, 2.0, "mean", -1)
    assert jnp.allclose(out_c, ref_c, rtol=1e-5, atol=1e-5), ("case C", out_c, ref_c)

    # Case D: (M, C) with a tiny class axis -> transpose fallback path.
    k1, k2 = jax.random.split(jax.random.PRNGKey(3), 2)
    Md, Cd = 300, 8
    xd = jax.random.normal(k1, (Md, Cd), jnp.float32)
    yd = jax.random.randint(k2, (Md,), 0, Cd, dtype=jnp.int32)
    out_d = jax.block_until_ready(multi_class_focal_loss(
        xd, yd, alpha=None, gamma=0.0, reduction="mean", ignore_index=-1))
    ref_d = _reference(xd, yd, None, 0.0, "mean", -1)
    assert jnp.allclose(out_d, ref_d, rtol=1e-5, atol=1e-5), ("case D", out_d, ref_d)

    print("KERNEL_OK")
</pallas_src>

<mosaic_0001>
module attributes {stable_mosaic.version = 11 : i64} {
  func.func @_focal_kernel_class_sublane(%arg0: i32, %arg1: i32, %arg2: i32, %arg3: memref<1x4x256xf32, #tpu.memory_space<vmem>>, %arg4: memref<1x1x256xi32, #tpu.memory_space<vmem>>, %arg5: memref<1x1x2xf32, #tpu.memory_space<smem>>, %arg6: memref<1x256xf32, #tpu.memory_space<vmem>>, %arg7: memref<1x256xf32, #tpu.memory_space<vmem>>) attributes {dimension_semantics = [#tpu.dimension_semantics<parallel>, #tpu.dimension_semantics<parallel>, #tpu.dimension_semantics<arbitrary>], iteration_bounds = array<i64: 2, 1, 1>, scalar_prefetch = 0 : i64, scratch_operands = 2 : i64, tpu.core_type = #tpu.core_type<tc>, window_params = [{transform_indices = @transform_0, window_bounds = array<i64: 1, 4, 256>}, {transform_indices = @transform_1, window_bounds = array<i64: 1, 1, 256>}, {transform_indices = @transform_2, window_bounds = array<i64: 1, 1, 2>}]} {
    %c0_i32 = arith.constant 0 : i32
    %0 = arith.cmpi eq, %arg2, %c0_i32 : i32
    %1 = arith.extui %0 : i1 to i32
    %c0_i32_0 = arith.constant 0 : i32
    %2 = arith.cmpi ne, %1, %c0_i32_0 : i32
    scf.if %2 {
      %cst_24 = arith.constant 0.000000e+00 : f32
      %57 = vector.broadcast %cst_24 : f32 to vector<1x256xf32>
      %c0_25 = arith.constant 0 : index
      %c0_26 = arith.constant 0 : index
      %58 = vector.load %arg6[%c0_25, %c0_26] : memref<1x256xf32, #tpu.memory_space<vmem>>, vector<1x256xf32>
      tpu.vector_store %arg6[%c0_25, %c0_26], %57 {strides = array<i32>} : memref<1x256xf32, #tpu.memory_space<vmem>>, vector<1x256xf32>,
      %cst_27 = arith.constant 0.000000e+00 : f32
      %59 = vector.broadcast %cst_27 : f32 to vector<1x256xf32>
      %c0_28 = arith.constant 0 : index
      %c0_29 = arith.constant 0 : index
      %60 = vector.load %arg7[%c0_28, %c0_29] : memref<1x256xf32, #tpu.memory_space<vmem>>, vector<1x256xf32>
      tpu.vector_store %arg7[%c0_28, %c0_29], %59 {strides = array<i32>} : memref<1x256xf32, #tpu.memory_space<vmem>>, vector<1x256xf32>,
    } else {
    }
    %c0 = arith.constant 0 : index
    %c0_1 = arith.constant 0 : index
    %c0_2 = arith.constant 0 : index
    %3 = vector.load %arg3[%c0, %c0_1, %c0_2] : memref<1x4x256xf32, #tpu.memory_space<vmem>>, vector<1x4x256xf32>
    %4 = vector.shape_cast %3 : vector<1x4x256xf32> to vector<4x256xf32>
    %c0_3 = arith.constant 0 : index
    %c0_4 = arith.constant 0 : index
    %c0_5 = arith.constant 0 : index
    %5 = vector.load %arg4[%c0_3, %c0_4, %c0_5] : memref<1x1x256xi32, #tpu.memory_space<vmem>>, vector<1x1x256xi32>
    %6 = vector.shape_cast %5 : vector<1x1x256xi32> to vector<1x256xi32>
    %7 = tpu.iota {dimensions = array<i32: 1>} : vector<1x256xi32>
    %c1_i32 = arith.constant 1 : i32
    %8 = arith.muli %arg1, %c1_i32 : i32
    %9 = arith.addi %8, %arg2 : i32
    %c256_i32 = arith.constant 256 : i32
    %10 = arith.muli %9, %c256_i32 : i32
    %11 = vector.broadcast %10 : i32 to vector<1x256xi32>
    %12 = arith.addi %7, %11 : vector<1x256xi32>
    %c-1_i32 = arith.constant -1 : i32
    %13 = vector.broadcast %c-1_i32 : i32 to vector<1x256xi32>
    %14 = arith.cmpi ne, %6, %13 : vector<1x256xi32>
    %c256_i32_6 = arith.constant 256 : i32
    %15 = vector.broadcast %c256_i32_6 : i32 to vector<1x256xi32>
    %16 = arith.cmpi slt, %12, %15 : vector<1x256xi32>
    %17 = arith.andi %14, %16 : vector<1x256xi1>
    %cst = arith.constant dense<0xFF800000> : vector<256xf32>
    %18 = vector.multi_reduction <maximumf>, %4, %cst [0] : vector<4x256xf32> to vector<256xf32>
    %19 = vector.shape_cast %18 : vector<256xf32> to vector<1x256xf32>
    %20 = vector.broadcast %19 : vector<1x256xf32> to vector<4x256xf32>
    %21 = arith.subf %4, %20 : vector<4x256xf32>
    %22 = math.exp %21 : vector<4x256xf32>
    %cst_7 = arith.constant dense<0.000000e+00> : vector<256xf32>
    %23 = vector.multi_reduction <add>, %22, %cst_7 [0] : vector<4x256xf32> to vector<256xf32>
    %24 = vector.shape_cast %23 : vector<256xf32> to vector<1x256xf32>
    %25 = math.log %24 : vector<1x256xf32>
    %26 = tpu.iota {dimensions = array<i32: 0>} : vector<4x1xi32>
    %27 = vector.broadcast %26 : vector<4x1xi32> to vector<4x256xi32>
    %28 = vector.broadcast %6 : vector<1x256xi32> to vector<4x256xi32>
    %29 = arith.cmpi eq, %27, %28 : vector<4x256xi32>
    %cst_8 = arith.constant 0.000000e+00 : f32
    %30 = vector.broadcast %cst_8 : f32 to vector<4x256xf32>
    %31 = arith.select %29, %21, %30 : vector<4x256xi1>, vector<4x256xf32>
    %cst_9 = arith.constant dense<0.000000e+00> : vector<256xf32>
    %32 = vector.multi_reduction <add>, %31, %cst_9 [0] : vector<4x256xf32> to vector<256xf32>
    %33 = vector.shape_cast %32 : vector<256xf32> to vector<1x256xf32>
    %34 = arith.subf %33, %25 : vector<1x256xf32>
    %35 = math.exp %34 : vector<1x256xf32>
    %cst_10 = arith.constant 1.000000e+00 : f32
    %36 = vector.broadcast %cst_10 : f32 to vector<1x256xf32>
    %37 = arith.subf %36, %35 : vector<1x256xf32>
    %cst_11 = arith.constant 0.000000e+00 : f32
    %38 = vector.broadcast %cst_11 : f32 to vector<1x256xf32>
    %39 = arith.maximumf %37, %38 : vector<1x256xf32>
    %40 = arith.mulf %39, %39 : vector<1x256xf32>
    %cst_12 = arith.constant 0.000000e+00 : f32
    %41 = vector.broadcast %cst_12 : f32 to vector<1x256xf32>
    %42 = arith.subf %41, %34 : vector<1x256xf32>
    %43 = arith.mulf %40, %42 : vector<1x256xf32>
    %c0_13 = arith.constant 0 : index
    %c0_14 = arith.constant 0 : index
    %44 = vector.load %arg6[%c0_13, %c0_14] : memref<1x256xf32, #tpu.memory_space<vmem>>, vector<1x256xf32>
    %cst_15 = arith.constant 0.000000e+00 : f32
    %45 = vector.broadcast %cst_15 : f32 to vector<1x256xf32>
    %46 = arith.select %17, %43, %45 : vector<1x256xi1>, vector<1x256xf32>
    %47 = arith.addf %44, %46 : vector<1x256xf32>
    %c0_16 = arith.constant 0 : index
    %c0_17 = arith.constant 0 : index
    %48 = vector.load %arg6[%c0_16, %c0_17] : memref<1x256xf32, #tpu.memory_space<vmem>>, vector<1x256xf32>
    tpu.vector_store %arg6[%c0_16, %c0_17], %47 {strides = array<i32>} : memref<1x256xf32, #tpu.memory_space<vmem>>, vector<1x256xf32>,
    %c0_18 = arith.constant 0 : index
    %c0_19 = arith.constant 0 : index
    %49 = vector.load %arg7[%c0_18, %c0_19] : memref<1x256xf32, #tpu.memory_space<vmem>>, vector<1x256xf32>
    %50 = arith.extui %17 : vector<1x256xi1> to vector<1x256xi32>
    %51 = arith.sitofp %50 : vector<1x256xi32> to vector<1x256xf32>
    %52 = arith.addf %49, %51 : vector<1x256xf32>
    %c0_20 = arith.constant 0 : index
    %c0_21 = arith.constant 0 : index
    %53 = vector.load %arg7[%c0_20, %c0_21] : memref<1x256xf32, #tpu.memory_space<vmem>>, vector<1x256xf32>
    tpu.vector_store %arg7[%c0_20, %c0_21], %52 {strides = array<i32>} : memref<1x256xf32, #tpu.memory_space<vmem>>, vector<1x256xf32>,
    %c0_i32_22 = arith.constant 0 : i32
    %54 = arith.cmpi eq, %arg2, %c0_i32_22 : i32
    %55 = arith.extui %54 : i1 to i32
    %c0_i32_23 = arith.constant 0 : i32
    %56 = arith.cmpi ne, %55, %c0_i32_23 : i32
    scf.if %56 {
      %c0_24 = arith.constant 0 : index
      %c0_25 = arith.constant 0 : index
      %57 = vector.load %arg6[%c0_24, %c0_25] : memref<1x256xf32, #tpu.memory_space<vmem>>, vector<1x256xf32>
      %58 = vector.shape_cast %57 : vector<1x256xf32> to vector<1x1x256xf32>
      %cst_26 = arith.constant dense<0.000000e+00> : vector<1xf32>
      %59 = vector.multi_reduction <add>, %58, %cst_26 [1, 2] : vector<1x1x256xf32> to vector<1xf32>
      %60 = vector.shape_cast %59 : vector<1xf32> to vector<1x1x1xf32>
      %61 = vector.extract %60[0, 0, 0] : f32 from vector<1x1x1xf32>
      %c0_27 = arith.constant 0 : index
      %c0_28 = arith.constant 0 : index
      %c0_29 = arith.constant 0 : index
      %62 = memref.load %arg5[%c0_27, %c0_28, %c0_29] : memref<1x1x2xf32, #tpu.memory_space<smem>>
      memref.store %61, %arg5[%c0_27, %c0_28, %c0_29] : memref<1x1x2xf32, #tpu.memory_space<smem>>
      %c0_30 = arith.constant 0 : index
      %c0_31 = arith.constant 0 : index
      %63 = vector.load %arg7[%c0_30, %c0_31] : memref<1x256xf32, #tpu.memory_space<vmem>>, vector<1x256xf32>
      %64 = vector.shape_cast %63 : vector<1x256xf32> to vector<1x1x256xf32>
      %cst_32 = arith.constant dense<0.000000e+00> : vector<1xf32>
      %65 = vector.multi_reduction <add>, %64, %cst_32 [1, 2] : vector<1x1x256xf32> to vector<1xf32>
      %66 = vector.shape_cast %65 : vector<1xf32> to vector<1x1x1xf32>
      %67 = vector.extract %66[0, 0, 0] : f32 from vector<1x1x1xf32>
      %c0_33 = arith.constant 0 : index
      %c0_34 = arith.constant 0 : index
      %c1 = arith.constant 1 : index
      %68 = memref.load %arg5[%c0_33, %c0_34, %c1] : memref<1x1x2xf32, #tpu.memory_space<smem>>
      memref.store %67, %arg5[%c0_33, %c0_34, %c1] : memref<1x1x2xf32, #tpu.memory_space<smem>>
    } else {
    }
    return
  }
  func.func @transform_0(%arg0: i32, %arg1: i32, %arg2: i32) -> (i32, i32, i32) {
    %c1_i32 = arith.constant 1 : i32
    %0 = arith.muli %arg1, %c1_i32 : i32
    %1 = arith.addi %0, %arg2 : i32
    %c0_i32 = arith.constant 0 : i32
    %2 = arith.minsi %1, %c0_i32 : i32
    %c0_i32_0 = arith.constant 0 : i32
    %c0_i32_1 = arith.constant 0 : i32
    return %arg0, %c0_i32_0, %2 : i32, i32, i32
  }
  func.func @transform_1(%arg0: i32, %arg1: i32, %arg2: i32) -> (i32, i32, i32) {
    %c1_i32 = arith.constant 1 : i32
    %0 = arith.muli %arg1, %c1_i32 : i32
    %1 = arith.addi %0, %arg2 : i32
    %c0_i32 = arith.constant 0 : i32
    %2 = arith.minsi %1, %c0_i32 : i32
    %c0_i32_0 = arith.constant 0 : i32
    %c0_i32_1 = arith.constant 0 : i32
    return %arg0, %c0_i32_0, %2 : i32, i32, i32
  }
  func.func @transform_2(%arg0: i32, %arg1: i32, %arg2: i32) -> (i32, i32, i32) {
    %c0_i32 = arith.constant 0 : i32
    %c0_i32_0 = arith.constant 0 : i32
    return %arg0, %arg1, %c0_i32 : i32, i32, i32
  }
}

</mosaic_0001>

<llo_original>
// kernel: tpu_custom_call.1
$region0: #{tpu_custom_call.1}
  #allocation0 [shape = 'u32[]', space=smem, size = 0x4, offset = 0x4, fixed_abs, tag = 'smem constant byte address 0x4 - core index']
  #allocation1 [shape = 'u32[72,128]{1,0:T(1,128)}', space=vmem, size = 0x9000, scoped, tag = 'internal scratch']
  #allocation2 [shape = 'f32[1,256]{1,0:T(1,128)}', space=vmem, size = 0x400, scoped, tag = 'scratch operand']
  #allocation3 [shape = 'f32[1,256]{1,0:T(1,128)}', space=vmem, size = 0x400, scoped, tag = 'scratch operand']
  %s0 = inlined_call_operand.hbm [shape: f32[2,4,256], index: 0, kind: input, shape index: {}]
  %s1 = inlined_call_operand.hbm [shape: s32[2,1,256], index: 1, kind: input, shape index: {}]
  %s2 = inlined_call_operand.hbm [shape: f32[2,1,2], index: 2, kind: output, shape index: {}]
  %s3 = sld [smem:[#allocation0]]
  $region57: #{tpu_custom_call.1} parent=0
    _
  %s5 = ssub.s32 1, %s3
  %s6 = scalar_select 0, %s5, %s3
  $region1: #{tpu_custom_call.1} parent=0
    #allocation4 [shape = 'u8[8192]{0}', space=vmem, size = 0x2000, scoped, tag = 'input window, operand 0']
    #allocation5 [shape = 's32[2]{0}', space=sflag, size = 0x8, scoped, tag = 'scoped memory for tpu_custom_call.1']
    #allocation6 [shape = 's32[2]{0}', space=sflag, size = 0x8, scoped, tag = 'scoped memory for tpu_custom_call.1']
    #allocation7 [shape = 'u8[2048]{0}', space=vmem, size = 0x800, scoped, tag = 'input window, operand 1']
    #allocation8 [shape = 's32[2]{0}', space=sflag, size = 0x8, scoped, tag = 'scoped memory for tpu_custom_call.1']
    #allocation9 [shape = 'u8[1024]{0}', space=smem, size = 0x400, scoped, tag = 'output window, operand 0']
    %7 = vsyncpa [#allocation5], 0
    %s8 = scalar_lea.sflag [#allocation5], 1
    %9 = vsyncpa %s8, 0
    %10 = vsyncpa [#allocation8], 0
    %s11 = scalar_lea.sflag [#allocation8], 1
    %12 = vsyncpa %s11, 0
    %13 = vsyncpa [#allocation6], 0
    %s14 = scalar_lea.sflag [#allocation6], 1
    %15 = vsyncpa %s14, 0
    loop: start=0, step=1, limit=4
    $region2: #{tpu_custom_call.1} parent=1 // loop_pre_header
      _
    $region3: #{tpu_custom_call.1} parent=1 // loop_header
      %s17 = sphi 0, %s21
      %p18 = scmp.ge.s32.totalorder %s17, 4
      %s24 = sphi 0, %s43
      %s25 = sphi 0, %s39
      %s26 = sphi 0, %s35
      %s27 = sphi 0, %s24
      %s28 = sphi 0, %s25
      %s29 = sphi 0, %s26
      %s30 = sphi 0, %s27
      %s31 = sphi 0, %s28
      %s32 = sphi 0, %s29
      %s54 = sphi 0, %s56
      %s57 = sphi 0, %s54
      %s58 = sphi 0, %s57
      %s74 = sphi 0, %s58
      %s88 = sphi 0, %s90
      %s91 = sphi 0, %s88
      %s92 = sphi 0, %s91
      %s108 = sphi 0, %s92
      %s116 = sphi 0, %s118
      %s119 = sphi 0, %s116
      %s120 = sphi 0, %s119
      %s136 = sphi 0, %s120
    $region4: #{tpu_custom_call.1} parent=1 // loop_header_branch
      %20 = sbr.rel (%p18) target = $region8
    $region5: #{tpu_custom_call.1} parent=1 // loop_body
      %s22 = ssub.s32 %s17, 1
      %s23 = ssub.s32 %s17, 2
      %s33 = sadd.s32 1, %s26
      %p34 = scmp.ge.s32.totalorder %s33, 1
      %s35 = scalar_select %p34, 0, %s33
      %s36 = sadd.s32 1, %s25
      %s37 = scalar_select %p34, %s36, %s25
      %p38 = scmp.ge.s32.totalorder %s37, 1
      %s39 = scalar_select %p38, 0, %s37
      %s40 = sadd.s32 1, %s24
      %s41 = scalar_select %p38, %s40, %s24
      %p42 = scmp.ge.s32.totalorder %s41, 2
      %s43 = scalar_select %p42, 0, %s41
      %s44 = sadd.s32 %s25, %s26
      %p45 = scmp.lt.s32.totalorder %s44, 0
      %s46 = scalar_select %p45, %s44, 0
      %s47 = sadd.s32 %s39, %s35
      %p48 = scmp.lt.s32.totalorder %s47, 0
      %s49 = scalar_select %p48, %s47, 0
      %s50 = ssub.s32 %s24, %s43
      %s51 = ssub.s32 %s46, %s49
      %s52 = sor.u32 %s50, %s51
      %p53 = scmp.eq.s32.totalorder %s52, 0
      %s55 = sadd.s32 %s54, 1
      %s56 = scalar_select %p53, %s54, %s55
      %p59 = pneg %p53
      %p60 = scmp.eq.s32.totalorder %s17, 1
      %p61 = por %p59, %p60
      %p62 = scmp.ne.s32.totalorder %s54, %s57
      %p63 = scmp.eq.s32.totalorder %s17, 0
      %p64 = por %p62, %p63
      %p65 = scmp.ne.s32.totalorder %s54, %s57
      %p66 = scmp.eq.s32.totalorder %s22, 1
      %p67 = por %p65, %p66
      %p68 = scmp.ne.s32.totalorder %s57, %s58
      %p69 = scmp.eq.s32.totalorder %s22, 0
      %p70 = por %p68, %p69
      %p71 = scmp.ne.s32.totalorder %s57, %s58
      %p72 = scmp.eq.s32.totalorder %s23, 1
      %p73 = por %p71, %p72
      %p75 = scmp.ne.s32.totalorder %s58, %s74
      %p76 = scmp.eq.s32.totalorder %s23, 0
      %p77 = por %p75, %p76
      %s78 = sadd.s32 %s25, %s26
      %p79 = scmp.lt.s32.totalorder %s78, 0
      %s80 = scalar_select %p79, %s78, 0
      %s81 = sadd.s32 %s39, %s35
      %p82 = scmp.lt.s32.totalorder %s81, 0
      %s83 = scalar_select %p82, %s81, 0
      %s84 = ssub.s32 %s24, %s43
      %s85 = ssub.s32 %s80, %s83
      %s86 = sor.u32 %s84, %s85
      %p87 = scmp.eq.s32.totalorder %s86, 0
      %s89 = sadd.s32 %s88, 1
      %s90 = scalar_select %p87, %s88, %s89
      %p93 = pneg %p87
      %p94 = scmp.eq.s32.totalorder %s17, 1
      %p95 = por %p93, %p94
      %p96 = scmp.ne.s32.totalorder %s88, %s91
      %p97 = scmp.eq.s32.totalorder %s17, 0
      %p98 = por %p96, %p97
      %p99 = scmp.ne.s32.totalorder %s88, %s91
      %p100 = scmp.eq.s32.totalorder %s22, 1
      %p101 = por %p99, %p100
      %p102 = scmp.ne.s32.totalorder %s91, %s92
      %p103 = scmp.eq.s32.totalorder %s22, 0
      %p104 = por %p102, %p103
      %p105 = scmp.ne.s32.totalorder %s91, %s92
      %p106 = scmp.eq.s32.totalorder %s23, 1
      %p107 = por %p105, %p106
      %p109 = scmp.ne.s32.totalorder %s92, %s108
      %p110 = scmp.eq.s32.totalorder %s23, 0
      %p111 = por %p109, %p110
      %s112 = ssub.s32 %s24, %s43
      %s113 = ssub.s32 %s25, %s39
      %s114 = sor.u32 %s112, %s113
      %p115 = scmp.eq.s32.totalorder %s114, 0
      %s117 = sadd.s32 %s116, 1
      %s118 = scalar_select %p115, %s116, %s117
      %p121 = pneg %p115
      %p122 = scmp.eq.s32.totalorder %s17, 1
      %p123 = por %p121, %p122
      %p124 = scmp.ne.s32.totalorder %s116, %s119
      %p125 = scmp.eq.s32.totalorder %s17, 0
      %p126 = por %p124, %p125
      %p127 = scmp.ne.s32.totalorder %s116, %s119
      %p128 = scmp.eq.s32.totalorder %s22, 1
      %p129 = por %p127, %p128
      %p130 = scmp.ne.s32.totalorder %s119, %s120
      %p131 = scmp.eq.s32.totalorder %s22, 0
      %p132 = por %p130, %p131
      %p133 = scmp.ne.s32.totalorder %s119, %s120
      %p134 = scmp.eq.s32.totalorder %s23, 1
      %p135 = por %p133, %p134
      %p137 = scmp.ne.s32.totalorder %s120, %s136
      %p138 = scmp.eq.s32.totalorder %s23, 0
      %p139 = por %p137, %p138
      %p140 = scmp.le.s32.totalorder 1, %s17
      %p141 = scmp.lt.s32.totalorder %s17, 3
      %p142 = pnand %p140, %p141
      %p143 = pneg %p142
      // Predicated region
      $region9: #{tpu_custom_call.1} parent=5 // pred_check
        _
      $region10: #{tpu_custom_call.1} parent=5 // pred_check_branch
        %145 = sbr.rel (%p142) target = $region12
      $region11: #{tpu_custom_call.1} parent=5 // pred_region
        %s146 = ssub.s32 %s17, 1
      $region12: #{tpu_custom_call.1} parent=5 // pred_fallthru
        _
      %p147 = scmp.lt.s32.totalorder %s17, 2
      // Predicated region
      $region13: #{tpu_custom_call.1} parent=5 // pred_check
        %p148 = pneg %p147
      $region14: #{tpu_custom_call.1} parent=5 // pred_check_branch
        %150 = sbr.rel (%p148) target = $region16
      $region15: #{tpu_custom_call.1} parent=5 // pred_region
        // Predicated region
        $region17: #{tpu_custom_call.1} parent=15 // pred_check
          %p151 = pneg %p64
        $region18: #{tpu_custom_call.1} parent=15 // pred_check_branch
          %153 = sbr.rel (%p151) target = $region20
        $region19: #{tpu_custom_call.1} parent=15 // pred_region
          %s154 = sand.u32 %s54, 1
          %s155 = scalar_lea.sflag [#allocation5], %s154
          %s156 = sand.u32 %s54, 1
          %s157 = smul.addr %s156, 8
          %s158 = scalar_lea.vmem [#allocation4], %s157
          %s159 = sadd.s32 %s25, %s26
          %p160 = scmp.lt.s32.totalorder %s159, 0
          %s161 = scalar_select %p160, %s159, 0
          %s162 = smul.u32 2, %s161
          %164 = vsyncadd %s155, 0
          %s165 = smul.addr %s24, 2
          %s166 = sadd.s32 %s162, %s165
          %s167 = smul.addr %s166, 4
          %s168 = scalar_lea.hbm %s0, %s167
          %s170 = sshll.u32 %s168, 4
          %s171 = int_to_ptr.hbm [resolvable:$true] %s170
          %s172 = sshll.u32 %s158, 4
          %s173 = int_to_ptr.vmem [resolvable:$true] %s172
          %175 = dma.hbm_to_vmem [thread:$0]  %s171, 128, %s173, %s155
        $region20: #{tpu_custom_call.1} parent=15 // pred_fallthru
          _
        // Predicated region
        $region21: #{tpu_custom_call.1} parent=15 // pred_check
          %p176 = pneg %p98
        $region22: #{tpu_custom_call.1} parent=15 // pred_check_branch
          %178 = sbr.rel (%p176) target = $region24
        $region23: #{tpu_custom_call.1} parent=15 // pred_region
          %s179 = sand.u32 %s88, 1
          %s180 = scalar_lea.sflag [#allocation8], %s179
          %s181 = sand.u32 %s88, 1
          %s182 = smul.addr %s181, 2
          %s183 = scalar_lea.vmem [#allocation7], %s182
          %s184 = sadd.s32 %s25, %s26
          %p185 = scmp.lt.s32.totalorder %s184, 0
          %s186 = scalar_select %p185, %s184, 0
          %s187 = smul.u32 2, %s186
          %189 = vsyncadd %s180, 0
          %s190 = smul.addr %s24, 2
          %s191 = sadd.s32 %s187, %s190
          %s192 = scalar_lea.hbm %s1, %s191
          %s194 = sshll.u32 %s192, 4
          %s195 = int_to_ptr.hbm [resolvable:$true] %s194
          %s196 = sshll.u32 %s183, 4
          %s197 = int_to_ptr.vmem [resolvable:$true] %s196
          %199 = dma.hbm_to_vmem [thread:$0]  %s195, 32, %s197, %s180
        $region24: #{tpu_custom_call.1} parent=15 // pred_fallthru
          _
      $region16: #{tpu_custom_call.1} parent=5 // pred_fallthru
        _
      %p200 = scmp.le.s32.totalorder 1, %s17
      %p201 = scmp.lt.s32.totalorder %s17, 3
      %p202 = pnand %p200, %p201
      %p203 = pneg %p202
      // Predicated region
      $region25: #{tpu_custom_call.1} parent=5 // pred_check
        _
      $region26: #{tpu_custom_call.1} parent=5 // pred_check_branch
        %205 = sbr.rel (%p202) target = $region28
      $region27: #{tpu_custom_call.1} parent=5 // pred_region
        %s206 = ssub.s32 %s17, 1
        %s207 = sand.u32 %s57, 1
        %s208 = scalar_lea.sflag [#allocation5], %s207
        %s209 = sand.u32 %s57, 1
        %s210 = smul.addr %s209, 8
        %s211 = scalar_lea.vmem [#allocation4], %s210
        // Predicated region
        $region29: #{tpu_custom_call.1} parent=27 // pred_check
          %p212 = pneg %p70
        $region30: #{tpu_custom_call.1} parent=27 // pred_check_branch
          %214 = sbr.rel (%p212) target = $region32
        $region31: #{tpu_custom_call.1} parent=27 // pred_region
          %216 = dma.done %s208, 128
        $region32: #{tpu_custom_call.1} parent=27 // pred_fallthru
          _
        %s217 = sand.u32 %s91, 1
        %s218 = scalar_lea.sflag [#allocation8], %s217
        %s219 = sand.u32 %s91, 1
        %s220 = smul.addr %s219, 2
        %s221 = scalar_lea.vmem [#allocation7], %s220
        // Predicated region
        $region33: #{tpu_custom_call.1} parent=27 // pred_check
          %p222 = pneg %p104
        $region34: #{tpu_custom_call.1} parent=27 // pred_check_branch
          %224 = sbr.rel (%p222) target = $region36
        $region35: #{tpu_custom_call.1} parent=27 // pred_region
          %226 = dma.done %s218, 32
        $region36: #{tpu_custom_call.1} parent=27 // pred_fallthru
          _
        %s227 = sand.u32 %s57, 1
        %s228 = scalar_lea.sflag [#allocation5], %s227
        %s229 = sand.u32 %s57, 1
        %s230 = smul.addr %s229, 8
        %s231 = scalar_lea.vmem [#allocation4], %s230
        %p232 = pneg %p70
        %p233 = pneg %p67
        %s234 = sand.u32 %s91, 1
        %s235 = scalar_lea.sflag [#allocation8], %s234
        %s236 = sand.u32 %s91, 1
        %s237 = smul.addr %s236, 2
        %s238 = scalar_lea.vmem [#allocation7], %s237
        %p239 = pneg %p104
        %p240 = pneg %p101
        %p241 = pneg %p132
        %p242 = pneg %p129
        %s243 = sand.u32 %s119, 1
        %s244 = scalar_lea.sflag [#allocation6], %s243
        %s245 = sand.u32 %s119, 1
        %s246 = smul.addr %s245, 128
        %s247 = scalar_lea.smem [#allocation9], %s246
        %s248 = sadd.s32 %s28, %s29
        %p249 = scmp.lt.s32.totalorder %s248, 0
        %s250 = scalar_select %p249, %s248, 0
        %s251 = smul.u32 2, %s250
        %s252 = sadd.s32 %s28, %s29
        %p253 = scmp.lt.s32.totalorder %s252, 0
        %s254 = scalar_select %p253, %s252, 0
        %s255 = smul.u32 2, %s254
        %p256 = scmp.eq.s32.totalorder %s29, 0
        // Predicated region
        $region37: #{tpu_custom_call.1} parent=27 // pred_check
          %p257 = pneg %p256
        $region38: #{tpu_custom_call.1} parent=27 // pred_check_branch
          %259 = sbr.rel (%p257) target = $region40
        $region39: #{tpu_custom_call.1} parent=27 // pred_region
          %v260 = vlaneseq
          %vm261 = vcmp.ge.s32.totalorder %v260, 0
          %vm262 = vcmp.lt.s32.totalorder %v260, 256
          %vm263 = vmand %vm261, %vm262
          %264 = vst.msk [vmem:[#allocation2] sm:$0x3] %vm263, 0.0
          %265 = vst.msk [vmem:[#allocation3] sm:$0x3] %vm263, 0.0
        $region40: #{tpu_custom_call.1} parent=27 // pred_fallthru
          _
        %v266 = vld [vmem:[%s211] sm:$0xff]
        %v267 = vld [vmem:[%s221] sm:$0x3]
        %v268 = vlaneseq
        %v269 = vand.u32 %v268, 127
        %v270 = vadd.s32 %v269, 128
        %s271 = sadd.s32 %s28, %s29
        %s272 = smul.u32 %s271, 256
        %v273 = vstv %s272
        %v274 = vadd.s32 %v269, %v273
        %v275 = vadd.s32 %v270, %v273
        %vm276 = vcmp.ne.s32.totalorder %v267, 4294967295
        %vm277 = vcmp.lt.s32.totalorder %v274, 256
        %vm278 = vcmp.lt.s32.totalorder %v275, 256
        %v279 = vsel %vm277, 1, 0
        %v280 = vsel %vm278, 1, 0
        %v281 = vrot.slane %v280, 7
        %vm282 = vcmask 1040384
        %v283 = vsel %vm282, %v279, %v281
        %vm284 = vcmp.ne.s32.totalorder %v283, 0
        %vm285 = vmand %vm276, %vm284
        %287 = vst [vmem:[#allocation1] ss:$2 sm:$0xff] %v266
        %v288 = vld.sshfl [vmem:[#allocation1] sm:$0xff pattern:$0x75316420]
        %v289 = vld.sshfl [vmem:[#allocation1 + $0x8] sm:$0xff pattern:$0x75316420]
        %vm292 = vcmask 1043456
        %v293 = vsel %vm292, %v288, -inf
        %v294 = vrot.slane %v293, 4
        %v295 = vmax.f32 %v293, %v294
        %v296 = vrot.slane %v295, 2
        %v297 = vmax.f32 %v295, %v296
        %v298 = vrot.slane %v297, 1
        %v299 = vmax.f32 %v297, %v298
        %v300 = vsel %vm292, %v289, -inf
        %v301 = vrot.slane %v300, 4
        %v302 = vmax.f32 %v300, %v301
        %v303 = vrot.slane %v302, 2
        %v304 = vmax.f32 %v302, %v303
        %v305 = vrot.slane %v304, 1
        %v306 = vmax.f32 %v304, %v305
        %v309 = vrot.slane %v306, 4
        %v310 = vsel %vm292, %v299, %v309
        %v312 = vsub.f32 %v266, %v310
        %v313 = vmul.f32 %v312, 1.442695
        %v314 = vpow.pop %v313
        %316 = vst [vmem:[#allocation1] ss:$2 sm:$0xff] %v314
        %v317 = vld.sshfl [vmem:[#allocation1] sm:$0xff pattern:$0x75316420]
        %v318 = vld.sshfl [vmem:[#allocation1 + $0x8] sm:$0xff pattern:$0x75316420]
        %v321 = vsel %vm292, %v317, 0.0
        %v322 = vrot.slane %v321, 4
        %v323 = vadd.f32 %v321, %v322
        %v324 = vrot.slane %v323, 2
        %v325 = vadd.f32 %v323, %v324
        %v326 = vrot.slane %v325, 1
        %v327 = vadd.f32 %v325, %v326
        %v328 = vsel %vm292, %v318, 0.0
        %v329 = vrot.slane %v328, 4
        %v330 = vadd.f32 %v328, %v329
        %v331 = vrot.slane %v330, 2
        %v332 = vadd.f32 %v330, %v331
        %v333 = vrot.slane %v332, 1
        %v334 = vadd.f32 %v332, %v333
        %v335 = vlog2.pop %v327
        %v336 = vmul.f32 %v335, 0.6931472
        %v337 = vlog2.pop %v334
        %v338 = vmul.f32 %v337, 0.6931472
        %v339 = vlaneseq
        %v340 = vshrl.u32 %v339, 7
        %v341 = vperm.slane %v267, 0
        %v342 = vperm.slane %v267, 1
        %vm343 = vcmp.eq.s32.totalorder %v340, %v341
        %vm344 = vcmp.eq.s32.totalorder %v340, %v342
        %346 = vst [vmem:[#allocation1] ss:$2 sm:$0xff] %v312
        %v347 = vld.sshfl [vmem:[#allocation1] sm:$0xff pattern:$0x75316420]
        %v348 = vld.sshfl [vmem:[#allocation1 + $0x8] sm:$0xff pattern:$0x75316420]
        %v351 = vsel %vm343, %v347, 0.0
        %v352 = vsel %vm344, %v348, 0.0
        %v353 = vsel %vm292, %v351, 0.0
        %v354 = vrot.slane %v353, 4
        %v355 = vadd.f32 %v353, %v354
        %v356 = vrot.slane %v355, 2
        %v357 = vadd.f32 %v355, %v356
        %v358 = vrot.slane %v357, 1
        %v359 = vadd.f32 %v357, %v358
        %v360 = vsel %vm292, %v352, 0.0
        %v361 = vrot.slane %v360, 4
        %v362 = vadd.f32 %v360, %v361
        %v363 = vrot.slane %v362, 2
        %v364 = vadd.f32 %v362, %v363
        %v365 = vrot.slane %v364, 1
        %v366 = vadd.f32 %v364, %v365
        %v367 = vsub.f32 %v359, %v336
        %v368 = vsub.f32 %v366, %v338
        %v369 = vmul.f32 %v367, 1.442695
        %v370 = vpow.pop %v369
        %v371 = vmul.f32 %v368, 1.442695
        %v372 = vpow.pop %v371
        %v373 = vsub.f32 1.0, %v370
        %v374 = vsub.f32 1.0, %v372
        %v375 = vmax.f32 %v373, 0.0
        %v376 = vmax.f32 %v374, 0.0
        %v377 = vmul.f32 %v375, %v375
        %v378 = vmul.f32 %v376, %v376
        %v379 = vsub.f32 0.0, %v367
        %v380 = vsub.f32 0.0, %v368
        %v381 = vmul.f32 %v377, %v379
        %v382 = vmul.f32 %v378, %v380
        %v383 = vld [vmem:[#allocation2] sm:$0x3]
        %v386 = vrot.slane %v382, 7
        %v387 = vsel %vm282, %v381, %v386
        %v389 = vsel %vm285, %v387, 0.0
        %v390 = vadd.f32 %v383, %v389
        %v391 = vlaneseq
        %vm392 = vcmp.ge.s32.totalorder %v391, 0
        %vm393 = vcmp.lt.s32.totalorder %v391, 256
        %vm394 = vmand %vm392, %vm393
        %395 = vst.msk [vmem:[#allocation2] sm:$0x3] %vm394, %v390
        %v396 = vld [vmem:[#allocation3] sm:$0x3]
        %v397 = vsel %vm285, 1, 0
        %v398 = vcvt.s32.f32 %v397
        %v399 = vadd.f32 %v396, %v398
        %400 = vst.msk [vmem:[#allocation3] sm:$0x3] %vm394, %v399
        // Predicated region
        $region41: #{tpu_custom_call.1} parent=27 // pred_check
          %p401 = pneg %p256
        $region42: #{tpu_custom_call.1} parent=27 // pred_check_branch
          %403 = sbr.rel (%p401) target = $region44
        $region43: #{tpu_custom_call.1} parent=27 // pred_region
          %v404 = vld [vmem:[#allocation2] sm:$0x3]
          %v406 = vperm.slane %v404, 0
          %v407 = vperm.slane %v404, 1
          %v410 = vsel %vm282, %v406, 0.0
          %v411 = vsel %vm282, %v407, 0.0
          %v412 = vadd.f32 %v410, %v411
          %413 = vadd.xlane.f32.xlu0 %v412
          %v414 = vpop.xlane.xlu0 %413
          %v415 = vrot.slane %v414, 4
          %v416 = vadd.f32 %v414, %v415
          %v417 = vrot.slane %v416, 2
          %v418 = vadd.f32 %v416, %v417
          %v419 = vrot.slane %v418, 1
          %v420 = vadd.f32 %v418, %v419
          %s421 = vtos %v420
          %s422 = scalar_lea.smem %s247, 0 [#allocation9]
          %423 = sst [smem:[%s422]] %s421
          %v424 = vld [vmem:[#allocation3] sm:$0x3]
          %v426 = vperm.slane %v424, 0
          %v427 = vperm.slane %v424, 1
          %v430 = vsel %vm282, %v426, 0.0
          %v431 = vsel %vm282, %v427, 0.0
          %v432 = vadd.f32 %v430, %v431
          %433 = vadd.xlane.f32.xlu0 %v432
          %v434 = vpop.xlane.xlu0 %433
          %v435 = vrot.slane %v434, 4
          %v436 = vadd.f32 %v434, %v435
          %v437 = vrot.slane %v436, 2
          %v438 = vadd.f32 %v436, %v437
          %v439 = vrot.slane %v438, 1
          %v440 = vadd.f32 %v438, %v439
          %s441 = vtos %v440
          %s442 = scalar_lea.smem %s247, 1 [#allocation9]
          %443 = sst [smem:[%s442]] %s441
        $region44: #{tpu_custom_call.1} parent=27 // pred_fallthru
          _
        %s444 = sand.u32 %s119, 1
        %s445 = scalar_lea.sflag [#allocation6], %s444
        %s446 = sand.u32 %s119, 1
        %s447 = smul.addr %s446, 128
        %s448 = scalar_lea.smem [#allocation9], %s447
        // Predicated region
        $region45: #{tpu_custom_call.1} parent=27 // pred_check
          %p449 = pneg %p129
        $region46: #{tpu_custom_call.1} parent=27 // pred_check_branch
          %451 = sbr.rel (%p449) target = $region48
        $region47: #{tpu_custom_call.1} parent=27 // pred_region
          %453 = vsyncadd %s445, 0
          %s454 = sadd.s32 %s28, %s27
          %s455 = scalar_lea.hbm %s2, %s454
          %s457 = sshll.u32 %s455, 4
          %s458 = int_to_ptr.hbm [resolvable:$true] %s457
          %460 = dma.smem_to_hbm %s448, 16, %s458, %s445
        $region48: #{tpu_custom_call.1} parent=27 // pred_fallthru
          _
      $region28: #{tpu_custom_call.1} parent=5 // pred_fallthru
        _
      %p461 = scmp.le.s32.totalorder 2, %s17
      // Predicated region
      $region49: #{tpu_custom_call.1} parent=5 // pred_check
        %p462 = pneg %p461
      $region50: #{tpu_custom_call.1} parent=5 // pred_check_branch
        %464 = sbr.rel (%p462) target = $region52
      $region51: #{tpu_custom_call.1} parent=5 // pred_region
        %s465 = ssub.s32 %s17, 2
        // Predicated region
        $region53: #{tpu_custom_call.1} parent=51 // pred_check
          %p466 = pneg %p135
        $region54: #{tpu_custom_call.1} parent=51 // pred_check_branch
          %468 = sbr.rel (%p466) target = $region56
        $region55: #{tpu_custom_call.1} parent=51 // pred_region
          %s469 = sand.u32 %s120, 1
          %s470 = scalar_lea.sflag [#allocation6], %s469
          %s471 = sand.u32 %s120, 1
          %s472 = smul.addr %s471, 128
          %s473 = scalar_lea.smem [#allocation9], %s472
          %475 = dma.done %s470, 16
        $region56: #{tpu_custom_call.1} parent=51 // pred_fallthru
          _
        %476 = sfence
      $region52: #{tpu_custom_call.1} parent=5 // pred_fallthru
        _
    $region6: #{tpu_custom_call.1} parent=1 // loop_footer
      %s21 = sadd.s32 1, %s17
    $region7: #{tpu_custom_call.1} parent=1 // loop_footer_branch
      %16 = sbr.rel target = $region3
    $region8: #{tpu_custom_call.1} parent=1 // loop_exit
      _
    %477 = vsyncpa [#allocation5], 1
    %s478 = scalar_lea.sflag [#allocation5], 1
    %479 = vsyncpa %s478, 1
    %480 = vsyncpa [#allocation8], 1
    %s481 = scalar_lea.sflag [#allocation8], 1
    %482 = vsyncpa %s481, 1
    %483 = vsyncpa [#allocation6], 1
    %s484 = scalar_lea.sflag [#allocation6], 1
    %485 = vsyncpa %s484, 1

</llo_original>
